<compile_context>
chip_gen: v6e
topology: v6e:2x2x1
jax: 0.10.0
libtpu: 0.0.40
codegen_flags: <defaults>
</compile_context>

<pallas_src>
import jax
import jax.numpy as jnp
from jax import lax
from jax.experimental import pallas as pl
from jax.experimental.pallas import tpu as pltpu


# Tap tables for ConvTranspose2d(kernel=4, stride=2, padding=1).
# From oy = 2*iy - 1 + ky, output parity p uses two (padded-shift, ky) pairs;
# the same table applies independently to rows and columns.
_TAPS = {
    0: ((1, 1), (0, 3)),   # even output rows / cols
    1: ((1, 2), (2, 0)),   # odd  output rows / cols
}


def _decoder_kernel(xcol_ref, w_ref, scale_ref, bias_ref, out_ref):
    # xcol_ref : [1, KP, TM]      bf16 im2col slab (taps*Cin on sublanes, pixels on lanes)
    # w_ref    : [4*Cout, KP]     bf16 folded ConvTranspose2d weight (all 4 parities stacked)
    # scale_ref: [4*Cout, 1]      f32 BN scale  = gamma / sqrt(var + eps)   (per output row)
    # bias_ref : [4*Cout, 1]      f32 BN bias   = (conv_b - mean)*scale + beta
    # out_ref  : [1, 4*Cout, TM]  f32 per-parity outputs, pixels (h,w) lane-dense
    acc = jnp.dot(w_ref[...], xcol_ref[0],
                  preferred_element_type=jnp.float32)      # one MXU call per grid step
    y = acc * scale_ref[...] + bias_ref[...]               # BatchNorm2d (eval, folded affine)
    out_ref[0] = jnp.maximum(y, 0.0)                       # ReLU; Dropout(0.2) = identity (eval)


def decoder_block_forward(x_nchw, w, conv_b, gamma, beta, run_mean, run_var,
                          eps=1e-5):
    """Pallas implementation of DecoderBlock.forward (eval-mode semantics)."""
    N, Cin, H, W = x_nchw.shape
    Cout = w.shape[1]
    HW = H * W
    K = 9 * Cin                       # 9 unique (ry, rx) shifts
    KP = ((K + 7) // 8) * 8           # pad contraction dim to a sublane multiple

    # ---- im2col over the 9 unique padded shifts (lane-dense: pixels last) ----
    xpad = jnp.pad(x_nchw.astype(jnp.float32), ((0, 0), (0, 0), (1, 1), (1, 1)))
    patches = [xpad[:, :, ry:ry + H, rx:rx + W]
               for ry in range(3) for rx in range(3)]                 # 9 x [N,Cin,H,W]
    xcol = jnp.stack(patches, axis=1).reshape(N, K, HW)                # [(ry,rx,ci),(h,w)]
    xcol = jnp.pad(xcol, ((0, 0), (0, KP - K), (0, 0))).astype(jnp.bfloat16)

    # ---- fold the 16 ConvTranspose2d taps into one [(c,py,px), (ry,rx,ci)] matrix
    # PyTorch ConvTranspose2d weight layout: w[ci, c, ky, kx]  (no spatial flip).
    wb = jnp.zeros((2, 2, 3, 3, Cin, Cout), jnp.float32)
    for py in range(2):
        for px in range(2):
            for ry, ky in _TAPS[py]:
                for rx, kx in _TAPS[px]:
                    wb = wb.at[py, px, ry, rx].set(w[:, :, ky, kx].astype(jnp.float32))
    w_big = jnp.transpose(wb, (5, 0, 1, 2, 3, 4)).reshape(4 * Cout, K)  # rows = c*4+2*py+px
    w_big = jnp.pad(w_big, ((0, 0), (0, KP - K))).astype(jnp.bfloat16)

    # ---- BatchNorm2d (eval) folded into per-row scale/bias (rows = (c,py,px)) ----
    scale_c = (gamma / jnp.sqrt(run_var + eps)).astype(jnp.float32)
    bias_c = ((conv_b - run_mean) * scale_c + beta).astype(jnp.float32)
    scale = jnp.repeat(scale_c, 4).reshape(4 * Cout, 1)
    bias = jnp.repeat(bias_c, 4).reshape(4 * Cout, 1)

    # ---- spatial (lane) tile: bounds per-step VMEM at real decoder resolutions
    # and gives a second parallel grid axis. (For very large Cin one would also
    # tile K; not needed at these channel counts.)
    TM = HW
    for cand in (4096, 2048, 1024, 512, 256, 128):
        if HW % cand == 0:
            TM = cand
            break
    grid = (N, HW // TM)

    out = pl.pallas_call(
        _decoder_kernel,
        out_shape=jax.ShapeDtypeStruct((N, 4 * Cout, HW), jnp.float32),
        grid_spec=pltpu.PrefetchScalarGridSpec(
            num_scalar_prefetch=0,
            grid=grid,
            in_specs=[
                pl.BlockSpec((1, KP, TM), lambda n, m: (n, 0, m)),
                pl.BlockSpec((4 * Cout, KP), lambda n, m: (0, 0)),
                pl.BlockSpec((4 * Cout, 1), lambda n, m: (0, 0)),
                pl.BlockSpec((4 * Cout, 1), lambda n, m: (0, 0)),
            ],
            out_specs=pl.BlockSpec((1, 4 * Cout, TM), lambda n, m: (n, 0, m)),
        ),
        compiler_params=pltpu.CompilerParams(
            dimension_semantics=("parallel", "parallel")),
    )(xcol, w_big, scale, bias)

    # out[n, (c,py,px), (h,w)] -> NCHW y[n, c, 2h+py, 2w+px] : single transpose pass.
    y = out.reshape(N, Cout, 2, 2, H, W)                 # (n, c, py, px, h, w)
    y = jnp.transpose(y, (0, 1, 4, 2, 5, 3))             # (n, c, h, py, w, px)
    return y.reshape(N, Cout, 2 * H, 2 * W)


def _reference_forward(x, w, conv_b, gamma, beta, run_mean, run_var, eps=1e-5):
    """Pure-JAX reference of the PyTorch forward (eval mode), NCHW, f32 HIGHEST."""
    w_flip = jnp.transpose(w, (1, 0, 2, 3))[:, :, ::-1, ::-1]  # [Cout, Cin, 4, 4]
    y = lax.conv_general_dilated(
        x, w_flip, window_strides=(1, 1), padding=((2, 2), (2, 2)),
        lhs_dilation=(2, 2),
        dimension_numbers=("NCHW", "OIHW", "NCHW"),
        precision=lax.Precision.HIGHEST)
    y = y + conv_b.reshape(1, -1, 1, 1)
    y = (y - run_mean.reshape(1, -1, 1, 1)) / jnp.sqrt(
        run_var.reshape(1, -1, 1, 1) + eps)
    y = y * gamma.reshape(1, -1, 1, 1) + beta.reshape(1, -1, 1, 1)
    return jnp.maximum(y, 0.0)


if __name__ == "__main__":
    N, Cin, Cout, H, W = 2, 4, 8, 16, 16

    key = jax.random.PRNGKey(0)
    kx, kw, kb, kg, kbe, km, kv = jax.random.split(key, 7)

    x = jax.random.normal(kx, (N, Cin, H, W), dtype=jnp.float32)
    # ConvTranspose2d weight shape: [in_channels, out_channels, kH, kW]
    w = 0.1 * jax.random.normal(kw, (Cin, Cout, 4, 4), dtype=jnp.float32)
    conv_b = 0.1 * jax.random.normal(kb, (Cout,), dtype=jnp.float32)
    gamma = jax.random.uniform(kg, (Cout,), minval=0.5, maxval=1.5, dtype=jnp.float32)
    beta = 0.1 * jax.random.normal(kbe, (Cout,), dtype=jnp.float32)
    run_mean = 0.1 * jax.random.normal(km, (Cout,), dtype=jnp.float32)
    run_var = jax.random.uniform(kv, (Cout,), minval=0.5, maxval=1.5, dtype=jnp.float32)

    fwd = jax.jit(decoder_block_forward)
    out = jax.block_until_ready(fwd(x, w, conv_b, gamma, beta, run_mean, run_var))

    ref = jax.block_until_ready(
        _reference_forward(x, w, conv_b, gamma, beta, run_mean, run_var))

    assert out.shape == (N, Cout, 2 * H, 2 * W), out.shape
    assert bool(jnp.all(jnp.isfinite(out)))
    # Tolerance accounts for bf16 MXU operands vs. the f32 HIGHEST-precision reference.
    assert bool(jnp.allclose(out, ref, atol=3e-2, rtol=3e-2)), (
        float(jnp.max(jnp.abs(out - ref))))

    print("KERNEL_OK")
</pallas_src>

<mosaic_0001>
module attributes {stable_mosaic.version = 11 : i64} {
  func.func @_decoder_kernel(%arg0: i32, %arg1: i32, %arg2: memref<1x40x256xbf16, #tpu.memory_space<vmem>>, %arg3: memref<32x40xbf16, #tpu.memory_space<vmem>>, %arg4: memref<32x1xf32, #tpu.memory_space<vmem>>, %arg5: memref<32x1xf32, #tpu.memory_space<vmem>>, %arg6: memref<1x32x256xf32, #tpu.memory_space<vmem>>) attributes {dimension_semantics = [#tpu.dimension_semantics<parallel>, #tpu.dimension_semantics<parallel>], iteration_bounds = array<i64: 2, 1>, scalar_prefetch = 0 : i64, scratch_operands = 0 : i64, tpu.core_type = #tpu.core_type<tc>, window_params = [{transform_indices = @transform_0, window_bounds = array<i64: 1, 40, 256>}, {pipeline_mode = #tpu.pipeline_mode<synchronous>, transform_indices = @transform_1, window_bounds = array<i64: 32, 40>}, {pipeline_mode = #tpu.pipeline_mode<synchronous>, transform_indices = @transform_2, window_bounds = array<i64: 32, 1>}, {pipeline_mode = #tpu.pipeline_mode<synchronous>, transform_indices = @transform_3, window_bounds = array<i64: 32, 1>}, {transform_indices = @transform_4, window_bounds = array<i64: 1, 32, 256>}]} {
    %c0 = arith.constant 0 : index
    %c0_0 = arith.constant 0 : index
    %0 = vector.load %arg3[%c0, %c0_0] : memref<32x40xbf16, #tpu.memory_space<vmem>>, vector<32x40xbf16>
    %c0_1 = arith.constant 0 : index
    %c0_2 = arith.constant 0 : index
    %c0_3 = arith.constant 0 : index
    %1 = vector.load %arg2[%c0_1, %c0_2, %c0_3] : memref<1x40x256xbf16, #tpu.memory_space<vmem>>, vector<1x40x256xbf16>
    %2 = vector.shape_cast %1 : vector<1x40x256xbf16> to vector<40x256xbf16>
    %cst = arith.constant dense<0.000000e+00> : vector<32x256xf32>
    %3 = tpu.matmul %0, %2, %cst {dimension_numbers = #tpu.dot_dimension_numbers<[1], [0], [0], [1], [0, 0, 1, 1], [], []>} : vector<32x40xbf16>, vector<40x256xbf16>, vector<32x256xf32> -> vector<32x256xf32>
    %c0_4 = arith.constant 0 : index
    %c0_5 = arith.constant 0 : index
    %4 = vector.load %arg4[%c0_4, %c0_5] : memref<32x1xf32, #tpu.memory_space<vmem>>, vector<32x1xf32>
    %5 = vector.broadcast %4 : vector<32x1xf32> to vector<32x256xf32>
    %6 = arith.mulf %3, %5 : vector<32x256xf32>
    %c0_6 = arith.constant 0 : index
    %c0_7 = arith.constant 0 : index
    %7 = vector.load %arg5[%c0_6, %c0_7] : memref<32x1xf32, #tpu.memory_space<vmem>>, vector<32x1xf32>
    %8 = vector.broadcast %7 : vector<32x1xf32> to vector<32x256xf32>
    %9 = arith.addf %6, %8 : vector<32x256xf32>
    %cst_8 = arith.constant 0.000000e+00 : f32
    %10 = vector.broadcast %cst_8 : f32 to vector<32x256xf32>
    %11 = arith.maximumf %9, %10 : vector<32x256xf32>
    %c0_9 = arith.constant 0 : index
    %c0_10 = arith.constant 0 : index
    %c0_11 = arith.constant 0 : index
    %12 = vector.load %arg6[%c0_9, %c0_10, %c0_11] : memref<1x32x256xf32, #tpu.memory_space<vmem>>, vector<1x32x256xf32>
    %13 = vector.shape_cast %12 : vector<1x32x256xf32> to vector<32x256xf32>
    %14 = vector.shape_cast %11 : vector<32x256xf32> to vector<1x32x256xf32>
    tpu.vector_store %arg6[%c0_9, %c0_10, %c0_11], %14 {strides = array<i32>} : memref<1x32x256xf32, #tpu.memory_space<vmem>>, vector<1x32x256xf32>,
    return
  }
  func.func @transform_0(%arg0: i32, %arg1: i32) -> (i32, i32, i32) {
    %c0_i32 = arith.constant 0 : i32
    %c0_i32_0 = arith.constant 0 : i32
    return %arg0, %c0_i32, %arg1 : i32, i32, i32
  }
  func.func @transform_1(%arg0: i32, %arg1: i32) -> (i32, i32) {
    %c0_i32 = arith.constant 0 : i32
    %c0_i32_0 = arith.constant 0 : i32
    %c0_i32_1 = arith.constant 0 : i32
    return %c0_i32, %c0_i32_0 : i32, i32
  }
  func.func @transform_2(%arg0: i32, %arg1: i32) -> (i32, i32) {
    %c0_i32 = arith.constant 0 : i32
    %c0_i32_0 = arith.constant 0 : i32
    %c0_i32_1 = arith.constant 0 : i32
    return %c0_i32, %c0_i32_0 : i32, i32
  }
  func.func @transform_3(%arg0: i32, %arg1: i32) -> (i32, i32) {
    %c0_i32 = arith.constant 0 : i32
    %c0_i32_0 = arith.constant 0 : i32
    %c0_i32_1 = arith.constant 0 : i32
    return %c0_i32, %c0_i32_0 : i32, i32
  }
  func.func @transform_4(%arg0: i32, %arg1: i32) -> (i32, i32, i32) {
    %c0_i32 = arith.constant 0 : i32
    %c0_i32_0 = arith.constant 0 : i32
    return %arg0, %c0_i32, %arg1 : i32, i32, i32
  }
}

</mosaic_0001>

<llo_original>
// kernel: decoder_block_forward.1
$region0: #{decoder_block_forward.1}
  #allocation0 [shape = 'u32[]', space=smem, size = 0x4, offset = 0x4, fixed_abs, tag = 'smem constant byte address 0x4 - core index']
  #allocation1 [shape = 'u32[144,128]{1,0:T(1,128)}', space=vmem, size = 0x12000, scoped, tag = 'internal scratch']
  %s0 = inlined_call_operand.vmem [shape: bf16[2,40,256], index: 0, kind: input, shape index: {}]
  %s1 = inlined_call_operand.vmem [shape: bf16[32,40], index: 1, kind: input, shape index: {}]
  %s2 = inlined_call_operand.vmem [shape: f32[32,1], index: 2, kind: input, shape index: {}]
  %s3 = inlined_call_operand.vmem [shape: f32[32,1], index: 3, kind: input, shape index: {}]
  %s4 = inlined_call_operand.vmem [shape: f32[2,32,256], index: 4, kind: output, shape index: {}]
  %s5 = sld [smem:[#allocation0]]
  $region49: #{decoder_block_forward.1} parent=0
    _
  %s7 = ssub.s32 1, %s5
  %s8 = scalar_select 0, %s7, %s5
  loop: start=0, step=1, limit=4
  $region2: #{decoder_block_forward.1} parent=0 // loop_pre_header
    _
  $region3: #{decoder_block_forward.1} parent=0 // loop_header
    %s10 = sphi 0, %s14
    %p11 = scmp.ge.s32.totalorder %s10, 4
    %s17 = sphi 0, %s29
    %s18 = sphi 0, %s25
    %s19 = sphi 0, %s17
    %s20 = sphi 0, %s18
    %s21 = sphi 0, %s19
    %s22 = sphi 0, %s20
    %s34 = sphi 0, %s36
    %s37 = sphi 0, %s34
    %s38 = sphi 0, %s37
    %s54 = sphi 0, %s38
    %s58 = sphi 0, %s58
    %s60 = sphi 0, %s58
    %s61 = sphi 0, %s60
    %s75 = sphi 0, %s61
    %s79 = sphi 0, %s79
    %s81 = sphi 0, %s79
    %s82 = sphi 0, %s81
    %s96 = sphi 0, %s82
    %s100 = sphi 0, %s100
    %s102 = sphi 0, %s100
    %s103 = sphi 0, %s102
    %s117 = sphi 0, %s103
    %s125 = sphi 0, %s127
    %s128 = sphi 0, %s125
    %s129 = sphi 0, %s128
    %s145 = sphi 0, %s129
  $region4: #{decoder_block_forward.1} parent=0 // loop_header_branch
    %13 = sbr.rel (%p11) target = $region8
  $region5: #{decoder_block_forward.1} parent=0 // loop_body
    %s15 = ssub.s32 %s10, 1
    %s16 = ssub.s32 %s10, 2
    %s23 = sadd.s32 1, %s18
    %p24 = scmp.ge.s32.totalorder %s23, 1
    %s25 = scalar_select %p24, 0, %s23
    %s26 = sadd.s32 1, %s17
    %s27 = scalar_select %p24, %s26, %s17
    %p28 = scmp.ge.s32.totalorder %s27, 2
    %s29 = scalar_select %p28, 0, %s27
    %s30 = ssub.s32 %s17, %s29
    %s31 = ssub.s32 %s18, %s25
    %s32 = sor.u32 %s30, %s31
    %p33 = scmp.eq.s32.totalorder %s32, 0
    %s35 = sadd.s32 %s34, 1
    %s36 = scalar_select %p33, %s34, %s35
    %p39 = pneg %p33
    %p40 = scmp.eq.s32.totalorder %s10, 1
    %p41 = por %p39, %p40
    %p42 = scmp.ne.s32.totalorder %s34, %s37
    %p43 = scmp.eq.s32.totalorder %s10, 0
    %p44 = por %p42, %p43
    %p45 = scmp.ne.s32.totalorder %s34, %s37
    %p46 = scmp.eq.s32.totalorder %s15, 1
    %p47 = por %p45, %p46
    %p48 = scmp.ne.s32.totalorder %s37, %s38
    %p49 = scmp.eq.s32.totalorder %s15, 0
    %p50 = por %p48, %p49
    %p51 = scmp.ne.s32.totalorder %s37, %s38
    %p52 = scmp.eq.s32.totalorder %s16, 1
    %p53 = por %p51, %p52
    %p55 = scmp.ne.s32.totalorder %s38, %s54
    %p56 = scmp.eq.s32.totalorder %s16, 0
    %p57 = por %p55, %p56
    %s59 = sadd.s32 %s58, 1
    %p62 = scmp.eq.s32.totalorder %s10, 1
    %p63 = scmp.ne.s32.totalorder %s58, %s60
    %p64 = scmp.eq.s32.totalorder %s10, 0
    %p65 = por %p63, %p64
    %p66 = scmp.ne.s32.totalorder %s58, %s60
    %p67 = scmp.eq.s32.totalorder %s15, 1
    %p68 = por %p66, %p67
    %p69 = scmp.ne.s32.totalorder %s60, %s61
    %p70 = scmp.eq.s32.totalorder %s15, 0
    %p71 = por %p69, %p70
    %p72 = scmp.ne.s32.totalorder %s60, %s61
    %p73 = scmp.eq.s32.totalorder %s16, 1
    %p74 = por %p72, %p73
    %p76 = scmp.ne.s32.totalorder %s61, %s75
    %p77 = scmp.eq.s32.totalorder %s16, 0
    %p78 = por %p76, %p77
    %s80 = sadd.s32 %s79, 1
    %p83 = scmp.eq.s32.totalorder %s10, 1
    %p84 = scmp.ne.s32.totalorder %s79, %s81
    %p85 = scmp.eq.s32.totalorder %s10, 0
    %p86 = por %p84, %p85
    %p87 = scmp.ne.s32.totalorder %s79, %s81
    %p88 = scmp.eq.s32.totalorder %s15, 1
    %p89 = por %p87, %p88
    %p90 = scmp.ne.s32.totalorder %s81, %s82
    %p91 = scmp.eq.s32.totalorder %s15, 0
    %p92 = por %p90, %p91
    %p93 = scmp.ne.s32.totalorder %s81, %s82
    %p94 = scmp.eq.s32.totalorder %s16, 1
    %p95 = por %p93, %p94
    %p97 = scmp.ne.s32.totalorder %s82, %s96
    %p98 = scmp.eq.s32.totalorder %s16, 0
    %p99 = por %p97, %p98
    %s101 = sadd.s32 %s100, 1
    %p104 = scmp.eq.s32.totalorder %s10, 1
    %p105 = scmp.ne.s32.totalorder %s100, %s102
    %p106 = scmp.eq.s32.totalorder %s10, 0
    %p107 = por %p105, %p106
    %p108 = scmp.ne.s32.totalorder %s100, %s102
    %p109 = scmp.eq.s32.totalorder %s15, 1
    %p110 = por %p108, %p109
    %p111 = scmp.ne.s32.totalorder %s102, %s103
    %p112 = scmp.eq.s32.totalorder %s15, 0
    %p113 = por %p111, %p112
    %p114 = scmp.ne.s32.totalorder %s102, %s103
    %p115 = scmp.eq.s32.totalorder %s16, 1
    %p116 = por %p114, %p115
    %p118 = scmp.ne.s32.totalorder %s103, %s117
    %p119 = scmp.eq.s32.totalorder %s16, 0
    %p120 = por %p118, %p119
    %s121 = ssub.s32 %s17, %s29
    %s122 = ssub.s32 %s18, %s25
    %s123 = sor.u32 %s121, %s122
    %p124 = scmp.eq.s32.totalorder %s123, 0
    %s126 = sadd.s32 %s125, 1
    %s127 = scalar_select %p124, %s125, %s126
    %p130 = pneg %p124
    %p131 = scmp.eq.s32.totalorder %s10, 1
    %p132 = por %p130, %p131
    %p133 = scmp.ne.s32.totalorder %s125, %s128
    %p134 = scmp.eq.s32.totalorder %s10, 0
    %p135 = por %p133, %p134
    %p136 = scmp.ne.s32.totalorder %s125, %s128
    %p137 = scmp.eq.s32.totalorder %s15, 1
    %p138 = por %p136, %p137
    %p139 = scmp.ne.s32.totalorder %s128, %s129
    %p140 = scmp.eq.s32.totalorder %s15, 0
    %p141 = por %p139, %p140
    %p142 = scmp.ne.s32.totalorder %s128, %s129
    %p143 = scmp.eq.s32.totalorder %s16, 1
    %p144 = por %p142, %p143
    %p146 = scmp.ne.s32.totalorder %s129, %s145
    %p147 = scmp.eq.s32.totalorder %s16, 0
    %p148 = por %p146, %p147
    %p149 = scmp.le.s32.totalorder 1, %s10
    %p150 = scmp.lt.s32.totalorder %s10, 3
    %p151 = pnand %p149, %p150
    %p152 = pneg %p151
    // Predicated region
    $region9: #{decoder_block_forward.1} parent=5 // pred_check
      _
    $region10: #{decoder_block_forward.1} parent=5 // pred_check_branch
      %154 = sbr.rel (%p151) target = $region12
    $region11: #{decoder_block_forward.1} parent=5 // pred_region
      %s155 = ssub.s32 %s10, 1
      // Predicated region
      $region13: #{decoder_block_forward.1} parent=11 // pred_check
        %p156 = pneg %p71
      $region14: #{decoder_block_forward.1} parent=11 // pred_check_branch
        %158 = sbr.rel (%p156) target = $region16
      $region15: #{decoder_block_forward.1} parent=11 // pred_region
        _
      $region16: #{decoder_block_forward.1} parent=11 // pred_fallthru
        _
      // Predicated region
      $region17: #{decoder_block_forward.1} parent=11 // pred_check
        %p159 = pneg %p92
      $region18: #{decoder_block_forward.1} parent=11 // pred_check_branch
        %161 = sbr.rel (%p159) target = $region20
      $region19: #{decoder_block_forward.1} parent=11 // pred_region
        _
      $region20: #{decoder_block_forward.1} parent=11 // pred_fallthru
        _
      // Predicated region
      $region21: #{decoder_block_forward.1} parent=11 // pred_check
        %p162 = pneg %p113
      $region22: #{decoder_block_forward.1} parent=11 // pred_check_branch
        %164 = sbr.rel (%p162) target = $region24
      $region23: #{decoder_block_forward.1} parent=11 // pred_region
        _
      $region24: #{decoder_block_forward.1} parent=11 // pred_fallthru
        _
    $region12: #{decoder_block_forward.1} parent=5 // pred_fallthru
      _
    %p165 = scmp.lt.s32.totalorder %s10, 2
    // Predicated region
    $region25: #{decoder_block_forward.1} parent=5 // pred_check
      %p166 = pneg %p165
    $region26: #{decoder_block_forward.1} parent=5 // pred_check_branch
      %168 = sbr.rel (%p166) target = $region28
    $region27: #{decoder_block_forward.1} parent=5 // pred_region
      // Predicated region
      $region29: #{decoder_block_forward.1} parent=27 // pred_check
        %p169 = pneg %p44
      $region30: #{decoder_block_forward.1} parent=27 // pred_check_branch
        %171 = sbr.rel (%p169) target = $region32
      $region31: #{decoder_block_forward.1} parent=27 // pred_region
        %s172 = smul.u32 2, %s18
        %p173 = scmp.lt.s32.totalorder %s17, 1
        %s174 = scalar_select %p173, %s17, 1
        %p175 = scmp.lt.s32.totalorder %s172, 1
        %s176 = scalar_select %p175, %s172, 1
        %s177 = smul.addr %s174, 10
        %s178 = sadd.s32 %s176, %s177
        %s179 = smul.addr %s178, 4
        %s180 = scalar_lea.vmem %s0, %s179
        %s181 = smul.u32 2, %s18
      $region32: #{decoder_block_forward.1} parent=27 // pred_fallthru
        _
    $region28: #{decoder_block_forward.1} parent=5 // pred_fallthru
      _
    %p182 = scmp.le.s32.totalorder 1, %s10
    %p183 = scmp.lt.s32.totalorder %s10, 3
    %p184 = pnand %p182, %p183
    %p185 = pneg %p184
    // Predicated region
    $region33: #{decoder_block_forward.1} parent=5 // pred_check
      _
    $region34: #{decoder_block_forward.1} parent=5 // pred_check_branch
      %187 = sbr.rel (%p184) target = $region36
    $region35: #{decoder_block_forward.1} parent=5 // pred_region
      %s188 = ssub.s32 %s10, 1
      %s189 = smul.u32 2, %s20
      %p190 = scmp.lt.s32.totalorder %s19, 1
      %s191 = scalar_select %p190, %s19, 1
      %p192 = scmp.lt.s32.totalorder %s189, 1
      %s193 = scalar_select %p192, %s189, 1
      %s194 = smul.addr %s191, 10
      %s195 = sadd.s32 %s193, %s194
      %s196 = smul.addr %s195, 4
      %s197 = scalar_lea.vmem %s0, %s196
      %p198 = pneg %p50
      %p199 = pneg %p47
      %p200 = pneg %p71
      %p201 = pneg %p68
      %p202 = pneg %p92
      %p203 = pneg %p89
      %p204 = pneg %p113
      %p205 = pneg %p110
      %p206 = pneg %p141
      %p207 = pneg %p138
      %s208 = smul.u32 2, %s20
      %p209 = scmp.lt.s32.totalorder %s19, 1
      %s210 = scalar_select %p209, %s19, 1
      %p211 = scmp.lt.s32.totalorder %s208, 1
      %s212 = scalar_select %p211, %s208, 1
      %s213 = smul.addr %s210, 8
      %s214 = sadd.s32 %s212, %s213
      %s215 = smul.addr %s214, 8
      %s216 = scalar_lea.vmem %s4, %s215
      %s217 = smul.u32 2, %s20
      %p218 = scmp.lt.s32.totalorder %s19, 1
      %s219 = scalar_select %p218, %s19, 1
      %p220 = scmp.lt.s32.totalorder %s217, 1
      %s221 = scalar_select %p220, %s217, 1
      %s222 = smul.addr %s219, 10
      %s223 = sadd.s32 %s221, %s222
      %s224 = smul.addr %s223, 4
      %s225 = scalar_lea.vmem %s0, %s224
      %s226 = smul.u32 2, %s20
      %s227 = smul.u32 2, %s20
      %p228 = scmp.lt.s32.totalorder %s19, 1
      %s229 = scalar_select %p228, %s19, 1
      %p230 = scmp.lt.s32.totalorder %s227, 1
      %s231 = scalar_select %p230, %s227, 1
      %s232 = smul.addr %s229, 8
      %s233 = sadd.s32 %s231, %s232
      %s234 = smul.addr %s233, 8
      %s235 = scalar_lea.vmem %s4, %s234
      %s236 = smul.u32 2, %s20
      %v238 = vld [vmem:[%s1] sm:$0xf]
      %v239 = vld [vmem:[%s1 + $0x4] sm:$0xf]
      %v240 = vld [vmem:[%s1 + $0x8] sm:$0xf]
      %v241 = vld [vmem:[%s1 + $0xc] sm:$0xf]
      %v242 = vld [vmem:[%s225] sm:$0xff]
      %v243 = vld [vmem:[%s225 + $0x8] sm:$0xff]
      %v244 = vld [vmem:[%s225 + $0x10] sm:$0xff]
      %v245 = vld [vmem:[%s225 + $0x18] sm:$0xff]
      %v246 = vld [vmem:[%s225 + $0x20] sm:$0xff]
      %v251 = vunpack.c.l.b16 %v238
      %v252 = vunpack.c.l.b16 %v239
      %v253 = vunpack.c.l.b16 %v240
      %v254 = vunpack.c.l.b16 %v241
      %v255 = vpack.c.b16 %v252, %v251
      %v256 = vpack.c.b16 %v254, %v253
      %v262 = vunpack.c.l.b16 %v242
      %v263 = vunpack.c.h.b16 %v242
      %v264 = vunpack.c.l.b16 %v243
      %v265 = vunpack.c.h.b16 %v243
      %v266 = vunpack.c.l.b16 %v244
      %v267 = vunpack.c.h.b16 %v244
      %v268 = vunpack.c.l.b16 %v245
      %v269 = vunpack.c.h.b16 %v245
      %v270 = vunpack.c.l.b16 %v246
      %v271 = vunpack.c.h.b16 %v246
      %v272 = vpack.c.b16 %v264, %v262
      %v273 = vpack.c.b16 %v265, %v263
      %v274 = vpack.c.b16 %v268, %v266
      %v275 = vpack.c.b16 %v269, %v267
      %v276 = vpack.c.b16 %v270, %v270
      %v277 = vpack.c.b16 %v271, %v271
      %vm282 = vcmask 326656
      %v284 = vsel %vm282, %v255, 0
      %v287 = vsel %vm282, %v256, 0
      %vm289 = vcmask 1043456
      %v291 = vsel %vm289, %v276, 0
      %v294 = vsel %vm289, %v277, 0
      %296 = vmatprep.subr.bf16.mxu0 0
      %297 = vmatpush1.bf16.msra.mxu0 0
      %298 = vmatprep.subr.bf16.mxu0 0
      %299 = vmatpush1.bf16.msra.mxu0 0
      %300 = vmatprep.subr.bf16.mxu0 0
      %301 = vmatpush1.bf16.msra.mxu0 0
      %302 = vmatprep.subr.bf16.mxu0 0
      %303 = vmatpush1.bf16.msra.mxu0 0
      %304 = vmatprep.subr.bf16.mxu0 0
      %305 = vmatpush1.bf16.msra.mxu0 0
      %306 = vmatprep.subr.bf16.mxu0 %v294
      %307 = vmatpush1.bf16.msra.mxu0 %v291
      %308 = vmatprep.subr.bf16.mxu0 %v275
      %309 = vmatpush1.bf16.msra.mxu0 %v274
      %310 = vmatprep.subr.bf16.mxu0 %v273
      %311 = vmatpush1.bf16.msra.mxu0 %v272
      %312 = vmatprep.subr.bf16.mxu0 0
      %313 = vmatpush2.bf16.msra.mxu0 0
      %314 = vmatprep.subr.bf16.mxu0 0
      %315 = vmatpush2.bf16.msra.mxu0 0
      %316 = vmatprep.subr.bf16.mxu0 0
      %317 = vmatpush2.bf16.msra.mxu0 0
      %318 = vmatprep.subr.bf16.mxu0 0
      %319 = vmatpush2.bf16.msra.mxu0 0
      %320 = vmatprep.subr.bf16.mxu0 0
      %321 = vmatpush2.bf16.msra.mxu0 0
      %322 = vmatprep.subr.bf16.mxu0 0
      %323 = vmatpush2.bf16.msra.mxu0 0
      %324 = vmatprep.subr.bf16.mxu0 0
      %325 = vmatpush2.bf16.msra.mxu0 0
      %326 = vmatprep.subr.bf16.mxu0 0
      %327 = vmatpush2.bf16.msra.mxu0 0
      %328 = vmatprep.mubr.bf16.mxu0 0
      %329 = vmatmul.mubr.bf16.gmra.mxu0 %v284
      %v330 = vpop.f32.mrf.mxu0
      %v331 = vadd.f32 0.0, %v330
      %v332 = vpop.f32.mrf.mxu0
      %v333 = vadd.f32 0.0, %v332
      %v334 = vpop.f32.mrf.mxu0
      %v335 = vadd.f32 0.0, %v334
      %v336 = vpop.f32.mrf.mxu0
      %v337 = vadd.f32 0.0, %v336
      %338 = vmatprep.mubr.bf16.mxu0 0
      %339 = vmatmul.mubr.bf16.gmra.mxu0 %v287
      %v340 = vpop.f32.mrf.mxu0
      %v341 = vadd.f32 0.0, %v340
      %v342 = vpop.f32.mrf.mxu0
      %v343 = vadd.f32 0.0, %v342
      %v344 = vpop.f32.mrf.mxu0
      %v345 = vadd.f32 0.0, %v344
      %v346 = vpop.f32.mrf.mxu0
      %v347 = vadd.f32 0.0, %v346
      %348 = vdwg.mxu0
      %v349 = vld [vmem:[%s2] sm:$0xff]
      %v350 = vld [vmem:[%s2 + $0x8] sm:$0xff]
      %v351 = vld [vmem:[%s2 + $0x10] sm:$0xff]
      %v352 = vld [vmem:[%s2 + $0x18] sm:$0xff]
      %354 = vset.pattern.permute.xlu0 0
      %355 = vperm.xlu0 %354, %v349
      %v356 = vpop.permute.xlu0 %355
      %359 = vset.pattern.permute.xlu0 0
      %360 = vperm.xlu0 %359, %v350
      %v361 = vpop.permute.xlu0 %360
      %364 = vset.pattern.permute.xlu0 0
      %365 = vperm.xlu0 %364, %v351
      %v366 = vpop.permute.xlu0 %365
      %369 = vset.pattern.permute.xlu0 0
      %370 = vperm.xlu0 %369, %v352
      %v371 = vpop.permute.xlu0 %370
      %v373 = vmul.f32 %v331, %v356
      %v374 = vmul.f32 %v333, %v356
      %v375 = vmul.f32 %v335, %v361
      %v376 = vmul.f32 %v337, %v361
      %v377 = vmul.f32 %v341, %v366
      %v378 = vmul.f32 %v343, %v366
      %v379 = vmul.f32 %v345, %v371
      %v380 = vmul.f32 %v347, %v371
      %v381 = vld [vmem:[%s3] sm:$0xff]
      %v382 = vld [vmem:[%s3 + $0x8] sm:$0xff]
      %v383 = vld [vmem:[%s3 + $0x10] sm:$0xff]
      %v384 = vld [vmem:[%s3 + $0x18] sm:$0xff]
      %386 = vset.pattern.permute.xlu0 0
      %387 = vperm.xlu0 %386, %v381
      %v388 = vpop.permute.xlu0 %387
      %391 = vset.pattern.permute.xlu0 0
      %392 = vperm.xlu0 %391, %v382
      %v393 = vpop.permute.xlu0 %392
      %396 = vset.pattern.permute.xlu0 0
      %397 = vperm.xlu0 %396, %v383
      %v398 = vpop.permute.xlu0 %397
      %401 = vset.pattern.permute.xlu0 0
      %402 = vperm.xlu0 %401, %v384
      %v403 = vpop.permute.xlu0 %402
      %v405 = vadd.f32 %v373, %v388
      %v406 = vadd.f32 %v374, %v388
      %v407 = vadd.f32 %v375, %v393
      %v408 = vadd.f32 %v376, %v393
      %v409 = vadd.f32 %v377, %v398
      %v410 = vadd.f32 %v378, %v398
      %v411 = vadd.f32 %v379, %v403
      %v412 = vadd.f32 %v380, %v403
      %v413 = vmax.f32 %v405, 0.0
      %v414 = vmax.f32 %v406, 0.0
      %v415 = vmax.f32 %v407, 0.0
      %v416 = vmax.f32 %v408, 0.0
      %v417 = vmax.f32 %v409, 0.0
      %v418 = vmax.f32 %v410, 0.0
      %v419 = vmax.f32 %v411, 0.0
      %v420 = vmax.f32 %v412, 0.0
      %421 = vst [vmem:[%s235] sm:$0xff] %v413
      %422 = vst [vmem:[%s235 + $0x8] sm:$0xff] %v414
      %423 = vst [vmem:[%s235 + $0x10] sm:$0xff] %v415
      %424 = vst [vmem:[%s235 + $0x18] sm:$0xff] %v416
      %425 = vst [vmem:[%s235 + $0x20] sm:$0xff] %v417
      %426 = vst [vmem:[%s235 + $0x28] sm:$0xff] %v418
      %427 = vst [vmem:[%s235 + $0x30] sm:$0xff] %v419
      %428 = vst [vmem:[%s235 + $0x38] sm:$0xff] %v420
      %s429 = smul.u32 2, %s20
      %p430 = scmp.lt.s32.totalorder %s19, 1
      %s431 = scalar_select %p430, %s19, 1
      %p432 = scmp.lt.s32.totalorder %s429, 1
      %s433 = scalar_select %p432, %s429, 1
      %s434 = smul.addr %s431, 8
      %s435 = sadd.s32 %s433, %s434
      %s436 = smul.addr %s435, 8
      %s437 = scalar_lea.vmem %s4, %s436
      // Predicated region
      $region37: #{decoder_block_forward.1} parent=35 // pred_check
        %p438 = pneg %p138
      $region38: #{decoder_block_forward.1} parent=35 // pred_check_branch
        %440 = sbr.rel (%p438) target = $region40
      $region39: #{decoder_block_forward.1} parent=35 // pred_region
        %s441 = smul.u32 2, %s20
      $region40: #{decoder_block_forward.1} parent=35 // pred_fallthru
        _
    $region36: #{decoder_block_forward.1} parent=5 // pred_fallthru
      _
    %p442 = scmp.le.s32.totalorder 2, %s10
    // Predicated region
    $region41: #{decoder_block_forward.1} parent=5 // pred_check
      %p443 = pneg %p442
    $region42: #{decoder_block_forward.1} parent=5 // pred_check_branch
      %445 = sbr.rel (%p443) target = $region44
    $region43: #{decoder_block_forward.1} parent=5 // pred_region
      %s446 = ssub.s32 %s10, 2
      // Predicated region
      $region45: #{decoder_block_forward.1} parent=43 // pred_check
        %p447 = pneg %p144
      $region46: #{decoder_block_forward.1} parent=43 // pred_check_branch
        %449 = sbr.rel (%p447) target = $region48
      $region47: #{decoder_block_forward.1} parent=43 // pred_region
        %s450 = smul.u32 2, %s22
        %p451 = scmp.lt.s32.totalorder %s21, 1
        %s452 = scalar_select %p451, %s21, 1
        %p453 = scmp.lt.s32.totalorder %s450, 1
        %s454 = scalar_select %p453, %s450, 1
        %s455 = smul.addr %s452, 8
        %s456 = sadd.s32 %s454, %s455
        %s457 = smul.addr %s456, 8
        %s458 = scalar_lea.vmem %s4, %s457
      $region48: #{decoder_block_forward.1} parent=43 // pred_fallthru
        _
    $region44: #{decoder_block_forward.1} parent=5 // pred_fallthru
      _
  $region6: #{decoder_block_forward.1} parent=0 // loop_footer
    %s14 = sadd.s32 1, %s10
  $region7: #{decoder_block_forward.1} parent=0 // loop_footer_branch
    %9 = sbr.rel target = $region3
  $region8: #{decoder_block_forward.1} parent=0 // loop_exit
    _

</llo_original>
